<compile_context>
chip_gen: v7x
topology: tpu7x:2x2x1
jax: 0.10.0
libtpu: 0.0.40
codegen_flags: <defaults>
</compile_context>

<pallas_src>
import functools

import jax
import jax.numpy as jnp
from jax.experimental import pallas as pl
from jax.experimental.pallas import tpu as pltpu

_LANES = 128


def _round_up(n, m):
    return ((n + m - 1) // m) * m


def _ceil_div(a, b):
    return (a + b - 1) // b


# -----------------------------------------------------------------------------
# Kernel: BN-folded Linear -> ReLU -> Linear -> ReLU -> Linear -> fused-heads
# Linear -> per-slice activation.  Weights are bf16, accumulation/epilogue f32,
# output is one lane-dense (block_b, S) f32 tile.
# -----------------------------------------------------------------------------
def _gmm_policy_kernel(min_std, mo, in_r, x_ref, w_ref, b_ref, out_ref):
    x = x_ref[...].astype(jnp.bfloat16)                       # (bb, IN_r)

    # Layer 1 (BN folded): only the first IN_r sublanes of the weight matter.
    w0 = w_ref[0, :in_r, :]                                    # (IN_r, S) bf16
    h = jnp.dot(x, w0, preferred_element_type=jnp.float32) + b_ref[0:1, :]
    h = jnp.maximum(h, 0.0)
    h = jnp.dot(h.astype(jnp.bfloat16), w_ref[1],
                preferred_element_type=jnp.float32) + b_ref[1:2, :]
    h = jnp.maximum(h, 0.0)
    share = jnp.dot(h.astype(jnp.bfloat16), w_ref[2],
                    preferred_element_type=jnp.float32) + b_ref[2:3, :]

    # Fused heads: columns [0, MO) = means, [MO, 2MO) = logstds,
    # [2MO, 2MO+M) = logits, remaining (zero-padded) columns stay zero.
    heads = jnp.dot(share.astype(jnp.bfloat16), w_ref[3],
                    preferred_element_type=jnp.float32) + b_ref[3:4, :]

    col = jax.lax.broadcasted_iota(jnp.int32, heads.shape, 1)
    # Numerically stable softplus (exp + log1p on the EUP).
    sp = jnp.maximum(heads, 0.0) + jnp.log1p(jnp.exp(-jnp.abs(heads))) + min_std
    out_ref[...] = jnp.where(col < mo, jnp.tanh(heads),
                             jnp.where(col < 2 * mo, sp, heads))


# -----------------------------------------------------------------------------
# Param packing (wrapper side, runs once): fold eval-mode BN into Linear #1,
# concatenate the three heads, zero-pad into one bf16 weight slab and one f32
# bias slab.
# -----------------------------------------------------------------------------
def pack_params(params, *, input_size, hidden_size, output_size, num_modes,
                bn_eps=1e-5):
    MO = output_size * num_modes
    head_w = 2 * MO + num_modes
    S = max(_round_up(input_size, _LANES),
            _round_up(hidden_size, _LANES),
            _round_up(head_w, _LANES))

    hi = jax.lax.Precision.HIGHEST

    # Fold eval-mode BatchNorm1d (running stats) into the first Linear (f32).
    scale = params["bn_gamma"] * jax.lax.rsqrt(params["bn_var"] + bn_eps)  # (1, IN)
    shift = params["bn_beta"] - params["bn_mean"] * scale                  # (1, IN)
    w1f = params["w1"] * scale.reshape(-1, 1)                              # (IN, H)
    b1f = params["b1"] + jnp.dot(shift, params["w1"], precision=hi)        # (1, H)

    # Fuse mean / logstd / logits heads into one matmul.
    wh = jnp.concatenate([params["wm"], params["ws"], params["wl"]], axis=1)
    bh = jnp.concatenate([params["bm"], params["bs"], params["bl"]], axis=1)

    def pad_sq(w):
        return jnp.zeros((S, S), jnp.float32).at[:w.shape[0], :w.shape[1]].set(w)

    def pad_row(b):
        return jnp.zeros((S,), jnp.float32).at[:b.shape[1]].set(b[0])

    w_slab = jnp.stack(
        [pad_sq(w1f), pad_sq(params["w2"]), pad_sq(params["w3"]), pad_sq(wh)]
    ).astype(jnp.bfloat16)                                                 # (4, S, S) bf16
    b_rows = jnp.stack(
        [pad_row(b1f), pad_row(params["b2"]), pad_row(params["b3"]), pad_row(bh)])
    # Pad bias slab rows to a sublane multiple so its block is (8, 128)-tiled.
    b_slab = jnp.zeros((8, S), jnp.float32).at[:4, :].set(b_rows)          # (8, S) f32
    return w_slab, b_slab


# -----------------------------------------------------------------------------
# Batch tiling heuristic: one big tile up to 512 rows (amortize per-step
# overhead); beyond that an EVEN number of >=2 steps (<=~512 rows each) so the
# "parallel" grid axis splits evenly across v7x's two TensorCores.
# -----------------------------------------------------------------------------
def _choose_batch_tiling(B, cap=512):
    Br = _round_up(max(B, 1), 8)
    if Br <= cap:
        return Br, Br
    steps = _ceil_div(Br, cap)
    if steps % 2:
        steps += 1
    block_b = _round_up(_ceil_div(Br, steps), 8)
    return block_b, steps * block_b


# -----------------------------------------------------------------------------
# Wrapper: batch-tiled grid (parallel), resident weight/bias blocks, one
# lane-dense output split back into (means, stds, logits).
# -----------------------------------------------------------------------------
def gmm_policy_forward(x, w_slab, b_slab, *, num_modes, output_size,
                       min_std=1e-4, block_b=None):
    B, in_dim = x.shape
    MO = num_modes * output_size
    S = w_slab.shape[-1]
    assert w_slab.shape == (4, S, S) and b_slab.shape == (8, S)
    assert in_dim <= S and 2 * MO + num_modes <= S

    in_r = _round_up(in_dim, 8)

    if block_b is None:
        block_b, Bp = _choose_batch_tiling(B)
    else:
        block_b = _round_up(block_b, 8)
        Bp = _round_up(B, block_b)
    grid_steps = Bp // block_b

    # Only the batch axis (and the feature axis up to a sublane multiple) is
    # padded; the input block's last dim equals the full array dim, so the
    # (8,128) rule is satisfied without lane padding.
    x_pad = jnp.zeros((Bp, in_r), jnp.float32).at[:B, :in_dim].set(
        x.astype(jnp.float32))

    cost = pl.CostEstimate(
        flops=2 * Bp * (in_r * S + 3 * S * S),
        transcendentals=3 * Bp * S,                 # exp + log1p + tanh
        bytes_accessed=(4 * x_pad.size             # f32 input
                        + grid_steps * 2 * w_slab.size   # bf16 weights per step
                        + 4 * b_slab.size           # f32 biases
                        + 4 * Bp * S),              # f32 output
    )

    out = pl.pallas_call(
        functools.partial(_gmm_policy_kernel, float(min_std), MO, in_r),
        out_shape=jax.ShapeDtypeStruct((Bp, S), jnp.float32),
        grid=(grid_steps,),
        in_specs=[
            pl.BlockSpec((block_b, in_r), lambda i: (i, 0)),   # activations: batch-tiled
            pl.BlockSpec((4, S, S), lambda i: (0, 0, 0)),      # weights: resident
            pl.BlockSpec((8, S), lambda i: (0, 0)),            # biases: resident
        ],
        out_specs=pl.BlockSpec((block_b, S), lambda i: (i, 0)),
        compiler_params=pltpu.CompilerParams(
            dimension_semantics=("parallel",)),
        cost_estimate=cost,
    )(x_pad, w_slab, b_slab)

    means = out[:B, :MO].reshape(B, num_modes, output_size)
    stds = out[:B, MO:2 * MO].reshape(B, num_modes, output_size)
    logits = out[:B, 2 * MO:2 * MO + num_modes]
    return means, stds, logits


# -----------------------------------------------------------------------------
# Deterministic parameter construction (matches GMMPolicy.__init__ shapes with
# input_size=IN, hidden_size=H, num_layers=2, output_size=O, num_modes=M).
# Linear weights are stored pre-transposed to (in, out).  BN stats are made
# non-trivial so the folding path is actually exercised.
# -----------------------------------------------------------------------------
def make_params(key, input_size, hidden_size, output_size, num_modes):
    keys = jax.random.split(key, 16)
    MO = output_size * num_modes

    def lin(kw, kb, fan_in, fan_out):
        bound = 1.0 / jnp.sqrt(fan_in)
        w = jax.random.uniform(kw, (fan_in, fan_out), jnp.float32, -bound, bound)
        b = jax.random.uniform(kb, (1, fan_out), jnp.float32, -bound, bound)
        return w, b

    w1, b1 = lin(keys[0], keys[1], input_size, hidden_size)
    w2, b2 = lin(keys[2], keys[3], hidden_size, hidden_size)
    w3, b3 = lin(keys[4], keys[5], hidden_size, hidden_size)
    wm, bm = lin(keys[6], keys[7], hidden_size, MO)
    ws, bs = lin(keys[8], keys[9], hidden_size, MO)
    wl, bl = lin(keys[10], keys[11], hidden_size, num_modes)

    return {
        "bn_gamma": 1.0 + 0.1 * jax.random.normal(keys[12], (1, input_size), jnp.float32),
        "bn_beta": 0.1 * jax.random.normal(keys[13], (1, input_size), jnp.float32),
        "bn_mean": 0.1 * jax.random.normal(keys[14], (1, input_size), jnp.float32),
        "bn_var": 1.0 + 0.1 * jax.random.uniform(keys[15], (1, input_size), jnp.float32),
        "w1": w1, "b1": b1, "w2": w2, "b2": b2, "w3": w3, "b3": b3,
        "wm": wm, "bm": bm, "ws": ws, "bs": bs, "wl": wl, "bl": bl,
    }


# Pure-JAX reference (un-folded, un-fused, exact-f32 math) for a sanity check.
def _reference(x, p, num_modes, output_size, min_std=1e-4, bn_eps=1e-5):
    hi = jax.lax.Precision.HIGHEST
    xn = (x - p["bn_mean"]) * jax.lax.rsqrt(p["bn_var"] + bn_eps) * p["bn_gamma"] + p["bn_beta"]
    h = jax.nn.relu(jnp.dot(xn, p["w1"], precision=hi) + p["b1"])
    h = jax.nn.relu(jnp.dot(h, p["w2"], precision=hi) + p["b2"])
    share = jnp.dot(h, p["w3"], precision=hi) + p["b3"]
    means = jnp.tanh(jnp.dot(share, p["wm"], precision=hi) + p["bm"]).reshape(
        x.shape[0], num_modes, output_size)
    stds = (jax.nn.softplus(jnp.dot(share, p["ws"], precision=hi) + p["bs"]) + min_std).reshape(
        x.shape[0], num_modes, output_size)
    logits = jnp.dot(share, p["wl"], precision=hi) + p["bl"]
    return means, stds, logits


if __name__ == "__main__":
    # Small shapes consistent with the module.
    B, IN, H, O, M = 8, 16, 32, 4, 5

    key = jax.random.PRNGKey(0)
    k_x, k_p = jax.random.split(key)
    x = jax.random.normal(k_x, (B, IN), jnp.float32)
    params = make_params(k_p, IN, H, O, M)

    w_slab, b_slab = pack_params(
        params, input_size=IN, hidden_size=H, output_size=O, num_modes=M)

    means, stds, logits = gmm_policy_forward(
        x, w_slab, b_slab, num_modes=M, output_size=O)
    jax.block_until_ready((means, stds, logits))

    ref_means, ref_stds, ref_logits = _reference(x, params, M, O)
    assert means.shape == (B, M, O) and stds.shape == (B, M, O) and logits.shape == (B, M)
    # Tolerance reflects single-pass bf16 MXU dots (f32 accumulate) vs the
    # exact-f32 reference: ~1e-2 absolute at these layer widths.
    tol = dict(atol=3e-2, rtol=3e-2)
    assert jnp.allclose(means, ref_means, **tol)
    assert jnp.allclose(stds, ref_stds, **tol)
    assert jnp.allclose(logits, ref_logits, **tol)

    print("KERNEL_OK")
</pallas_src>

<mosaic_0001>
module attributes {stable_mosaic.version = 11 : i64} {
  func.func @_gmm_policy_kernel(%arg0: i32, %arg1: memref<8x16xf32, #tpu.memory_space<vmem>>, %arg2: memref<4x128x128xbf16, #tpu.memory_space<vmem>>, %arg3: memref<8x128xf32, #tpu.memory_space<vmem>>, %arg4: memref<8x128xf32, #tpu.memory_space<vmem>>) attributes {dimension_semantics = [#tpu.dimension_semantics<parallel>], iteration_bounds = array<i64: 1>, scalar_prefetch = 0 : i64, scratch_operands = 0 : i64, tpu.core_type = #tpu.core_type<tc>, window_params = [{transform_indices = @transform_0, window_bounds = array<i64: 8, 16>}, {pipeline_mode = #tpu.pipeline_mode<synchronous>, transform_indices = @transform_1, window_bounds = array<i64: 4, 128, 128>}, {pipeline_mode = #tpu.pipeline_mode<synchronous>, transform_indices = @transform_2, window_bounds = array<i64: 8, 128>}, {transform_indices = @transform_3, window_bounds = array<i64: 8, 128>}]} {
    %c0 = arith.constant 0 : index
    %c0_0 = arith.constant 0 : index
    %0 = vector.load %arg1[%c0, %c0_0] : memref<8x16xf32, #tpu.memory_space<vmem>>, vector<8x16xf32>
    %1 = arith.truncf %0 : vector<8x16xf32> to vector<8x16xbf16>
    %c0_1 = arith.constant 0 : index
    %c0_2 = arith.constant 0 : index
    %c0_3 = arith.constant 0 : index
    %2 = vector.load %arg2[%c0_1, %c0_2, %c0_3] : memref<4x128x128xbf16, #tpu.memory_space<vmem>>, vector<1x16x128xbf16>
    %3 = vector.shape_cast %2 : vector<1x16x128xbf16> to vector<16x128xbf16>
    %cst = arith.constant dense<0.000000e+00> : vector<8x128xf32>
    %4 = tpu.matmul %1, %3, %cst {dimension_numbers = #tpu.dot_dimension_numbers<[1], [0], [0], [1], [0, 0, 1, 1], [], []>} : vector<8x16xbf16>, vector<16x128xbf16>, vector<8x128xf32> -> vector<8x128xf32>
    %c0_4 = arith.constant 0 : index
    %c0_5 = arith.constant 0 : index
    %5 = vector.load %arg3[%c0_4, %c0_5] : memref<8x128xf32, #tpu.memory_space<vmem>>, vector<1x128xf32>
    %6 = vector.broadcast %5 : vector<1x128xf32> to vector<8x128xf32>
    %7 = arith.addf %4, %6 : vector<8x128xf32>
    %cst_6 = arith.constant 0.000000e+00 : f32
    %8 = vector.broadcast %cst_6 : f32 to vector<8x128xf32>
    %9 = arith.maximumf %7, %8 : vector<8x128xf32>
    %10 = arith.truncf %9 : vector<8x128xf32> to vector<8x128xbf16>
    %c1 = arith.constant 1 : index
    %c0_7 = arith.constant 0 : index
    %c0_8 = arith.constant 0 : index
    %11 = vector.load %arg2[%c1, %c0_7, %c0_8] : memref<4x128x128xbf16, #tpu.memory_space<vmem>>, vector<1x128x128xbf16>
    %12 = vector.shape_cast %11 : vector<1x128x128xbf16> to vector<128x128xbf16>
    %cst_9 = arith.constant dense<0.000000e+00> : vector<8x128xf32>
    %13 = tpu.matmul %10, %12, %cst_9 {dimension_numbers = #tpu.dot_dimension_numbers<[1], [0], [0], [1], [0, 0, 1, 1], [], []>} : vector<8x128xbf16>, vector<128x128xbf16>, vector<8x128xf32> -> vector<8x128xf32>
    %c1_10 = arith.constant 1 : index
    %c0_11 = arith.constant 0 : index
    %14 = vector.load %arg3[%c1_10, %c0_11] : memref<8x128xf32, #tpu.memory_space<vmem>>, vector<1x128xf32>
    %15 = vector.broadcast %14 : vector<1x128xf32> to vector<8x128xf32>
    %16 = arith.addf %13, %15 : vector<8x128xf32>
    %cst_12 = arith.constant 0.000000e+00 : f32
    %17 = vector.broadcast %cst_12 : f32 to vector<8x128xf32>
    %18 = arith.maximumf %16, %17 : vector<8x128xf32>
    %19 = arith.truncf %18 : vector<8x128xf32> to vector<8x128xbf16>
    %c2 = arith.constant 2 : index
    %c0_13 = arith.constant 0 : index
    %c0_14 = arith.constant 0 : index
    %20 = vector.load %arg2[%c2, %c0_13, %c0_14] : memref<4x128x128xbf16, #tpu.memory_space<vmem>>, vector<1x128x128xbf16>
    %21 = vector.shape_cast %20 : vector<1x128x128xbf16> to vector<128x128xbf16>
    %cst_15 = arith.constant dense<0.000000e+00> : vector<8x128xf32>
    %22 = tpu.matmul %19, %21, %cst_15 {dimension_numbers = #tpu.dot_dimension_numbers<[1], [0], [0], [1], [0, 0, 1, 1], [], []>} : vector<8x128xbf16>, vector<128x128xbf16>, vector<8x128xf32> -> vector<8x128xf32>
    %c2_16 = arith.constant 2 : index
    %c0_17 = arith.constant 0 : index
    %23 = vector.load %arg3[%c2_16, %c0_17] : memref<8x128xf32, #tpu.memory_space<vmem>>, vector<1x128xf32>
    %24 = vector.broadcast %23 : vector<1x128xf32> to vector<8x128xf32>
    %25 = arith.addf %22, %24 : vector<8x128xf32>
    %26 = arith.truncf %25 : vector<8x128xf32> to vector<8x128xbf16>
    %c3 = arith.constant 3 : index
    %c0_18 = arith.constant 0 : index
    %c0_19 = arith.constant 0 : index
    %27 = vector.load %arg2[%c3, %c0_18, %c0_19] : memref<4x128x128xbf16, #tpu.memory_space<vmem>>, vector<1x128x128xbf16>
    %28 = vector.shape_cast %27 : vector<1x128x128xbf16> to vector<128x128xbf16>
    %cst_20 = arith.constant dense<0.000000e+00> : vector<8x128xf32>
    %29 = tpu.matmul %26, %28, %cst_20 {dimension_numbers = #tpu.dot_dimension_numbers<[1], [0], [0], [1], [0, 0, 1, 1], [], []>} : vector<8x128xbf16>, vector<128x128xbf16>, vector<8x128xf32> -> vector<8x128xf32>
    %c3_21 = arith.constant 3 : index
    %c0_22 = arith.constant 0 : index
    %30 = vector.load %arg3[%c3_21, %c0_22] : memref<8x128xf32, #tpu.memory_space<vmem>>, vector<1x128xf32>
    %31 = vector.broadcast %30 : vector<1x128xf32> to vector<8x128xf32>
    %32 = arith.addf %29, %31 : vector<8x128xf32>
    %33 = tpu.iota {dimensions = array<i32: 1>} : vector<8x128xi32>
    %cst_23 = arith.constant 0.000000e+00 : f32
    %34 = vector.broadcast %cst_23 : f32 to vector<8x128xf32>
    %35 = arith.maximumf %32, %34 : vector<8x128xf32>
    %36 = math.absf %32 : vector<8x128xf32>
    %cst_24 = arith.constant 0.000000e+00 : f32
    %37 = vector.broadcast %cst_24 : f32 to vector<8x128xf32>
    %38 = arith.subf %37, %36 : vector<8x128xf32>
    %39 = math.exp %38 : vector<8x128xf32>
    %40 = math.log1p %39 : vector<8x128xf32>
    %41 = arith.addf %35, %40 : vector<8x128xf32>
    %cst_25 = arith.constant 9.99999974E-5 : f32
    %42 = vector.broadcast %cst_25 : f32 to vector<8x128xf32>
    %43 = arith.addf %41, %42 : vector<8x128xf32>
    %c20_i32 = arith.constant 20 : i32
    %44 = vector.broadcast %c20_i32 : i32 to vector<8x128xi32>
    %45 = arith.cmpi slt, %33, %44 : vector<8x128xi32>
    %46 = math.tanh %32 : vector<8x128xf32>
    %c40_i32 = arith.constant 40 : i32
    %47 = vector.broadcast %c40_i32 : i32 to vector<8x128xi32>
    %48 = arith.cmpi slt, %33, %47 : vector<8x128xi32>
    %49 = arith.select %48, %43, %32 : vector<8x128xi1>, vector<8x128xf32>
    %50 = arith.select %45, %46, %49 : vector<8x128xi1>, vector<8x128xf32>
    %c0_26 = arith.constant 0 : index
    %c0_27 = arith.constant 0 : index
    %51 = vector.load %arg4[%c0_26, %c0_27] : memref<8x128xf32, #tpu.memory_space<vmem>>, vector<8x128xf32>
    tpu.vector_store %arg4[%c0_26, %c0_27], %50 {strides = array<i32>} : memref<8x128xf32, #tpu.memory_space<vmem>>, vector<8x128xf32>,
    return
  }
  func.func @transform_0(%arg0: i32) -> (i32, i32) {
    %c0_i32 = arith.constant 0 : i32
    %c0_i32_0 = arith.constant 0 : i32
    return %arg0, %c0_i32 : i32, i32
  }
  func.func @transform_1(%arg0: i32) -> (i32, i32, i32) {
    %c0_i32 = arith.constant 0 : i32
    %c0_i32_0 = arith.constant 0 : i32
    %c0_i32_1 = arith.constant 0 : i32
    %c0_i32_2 = arith.constant 0 : i32
    return %c0_i32, %c0_i32_0, %c0_i32_1 : i32, i32, i32
  }
  func.func @transform_2(%arg0: i32) -> (i32, i32) {
    %c0_i32 = arith.constant 0 : i32
    %c0_i32_0 = arith.constant 0 : i32
    %c0_i32_1 = arith.constant 0 : i32
    return %c0_i32, %c0_i32_0 : i32, i32
  }
  func.func @transform_3(%arg0: i32) -> (i32, i32) {
    %c0_i32 = arith.constant 0 : i32
    %c0_i32_0 = arith.constant 0 : i32
    return %arg0, %c0_i32 : i32, i32
  }
}

</mosaic_0001>

<llo_original>
// kernel: tpu_custom_call.1
$region0: #{tpu_custom_call.1}
  #allocation0 [shape = 'u32[]', space=smem, size = 0x4, offset = 0x4, fixed_abs, tag = 'smem constant byte address 0x4 - core index']
  #allocation1 [shape = 'u32[144,128]{1,0:T(1,128)}', space=vmem, size = 0x12000, scoped, tag = 'internal scratch']
  %s0 = inlined_call_operand.hbm [shape: f32[8,16], index: 0, kind: input, shape index: {}]
  %s1 = inlined_call_operand.hbm [shape: bf16[4,128,128], index: 1, kind: input, shape index: {}]
  %s2 = inlined_call_operand.hbm [shape: f32[8,128], index: 2, kind: input, shape index: {}]
  %s3 = inlined_call_operand.hbm [shape: f32[8,128], index: 3, kind: output, shape index: {}]
  %s4 = sld [smem:[#allocation0]]
  $region34: #{tpu_custom_call.1} parent=0
    _
  %s6 = ssub.s32 1, %s4
  %s7 = scalar_select 0, %s6, %s4
  $region1: #{tpu_custom_call.1} parent=0
    #allocation2 [shape = 'u8[4096]{0}', space=vmem, size = 0x1000, scoped, tag = 'input window, operand 0, single buffered']
    #allocation3 [shape = 's32[1]{0}', space=sflag, size = 0x4, scoped, tag = 'scoped memory for tpu_custom_call.1']
    #allocation4 [shape = 's32[1]{0}', space=sflag, size = 0x4, scoped, tag = 'scoped memory for tpu_custom_call.1']
    #allocation5 [shape = 'u8[131072]{0}', space=vmem, size = 0x20000, scoped, tag = 'input window, operand 1, single buffered']
    #allocation6 [shape = 's32[1]{0}', space=sflag, size = 0x4, scoped, tag = 'scoped memory for tpu_custom_call.1']
    #allocation7 [shape = 'u8[4096]{0}', space=vmem, size = 0x1000, scoped, tag = 'input window, operand 2, single buffered']
    #allocation8 [shape = 'u8[4096]{0}', space=vmem, size = 0x1000, scoped, tag = 'output window, operand 0, single buffered']
    %8 = vsyncpa [#allocation3], 0
    %9 = vsyncpa [#allocation6], 0
    %10 = vsyncpa [#allocation4], 0
    // Predicated region
    $region2: #{tpu_custom_call.1} parent=1 // pred_check
      _
    $region3: #{tpu_custom_call.1} parent=1 // pred_check_branch
      %12 = sbr.rel (0) target = $region5
    $region4: #{tpu_custom_call.1} parent=1 // pred_region
      %s14 = ssub.s32 128, 128
      %15 = vsyncadd [#allocation3], %s14
      %s17 = sshll.u32 [#allocation2], 4
      %s18 = int_to_ptr.vmem [resolvable:$true] %s17
      %20 = dma.hbm_to_vmem [thread:$0]  %s0, 128, %s18, [#allocation3]
    $region5: #{tpu_custom_call.1} parent=1 // pred_fallthru
      _
    // Predicated region
    $region6: #{tpu_custom_call.1} parent=1 // pred_check
      _
    $region7: #{tpu_custom_call.1} parent=1 // pred_check_branch
      %22 = sbr.rel (0) target = $region9
    $region8: #{tpu_custom_call.1} parent=1 // pred_region
      %s24 = ssub.s32 4096, 4096
      %25 = vsyncadd [#allocation6], %s24
      %s26 = sshll.u32 [#allocation5], 4
      %s27 = int_to_ptr.vmem [resolvable:$true] %s26
      %32 = dma.hbm_to_vmem [thread:$0]  %s1, 4096, %s27, [#allocation6], 64, 64, 4
    $region9: #{tpu_custom_call.1} parent=1 // pred_fallthru
      _
    // Predicated region
    $region10: #{tpu_custom_call.1} parent=1 // pred_check
      _
    $region11: #{tpu_custom_call.1} parent=1 // pred_check_branch
      %34 = sbr.rel (0) target = $region13
    $region12: #{tpu_custom_call.1} parent=1 // pred_region
      %s36 = ssub.s32 128, 128
      %37 = vsyncadd [#allocation6], %s36
      %s39 = sshll.u32 [#allocation7], 4
      %s40 = int_to_ptr.vmem [resolvable:$true] %s39
      %42 = dma.hbm_to_vmem [thread:$0]  %s2, 128, %s40, [#allocation6]
    $region13: #{tpu_custom_call.1} parent=1 // pred_fallthru
      _
    // Predicated region
    $region14: #{tpu_custom_call.1} parent=1 // pred_check
      _
    $region15: #{tpu_custom_call.1} parent=1 // pred_check_branch
      %44 = sbr.rel (0) target = $region17
    $region16: #{tpu_custom_call.1} parent=1 // pred_region
      %45 = dma.done [#allocation3], 128
    $region17: #{tpu_custom_call.1} parent=1 // pred_fallthru
      _
    // Predicated region
    $region18: #{tpu_custom_call.1} parent=1 // pred_check
      _
    $region19: #{tpu_custom_call.1} parent=1 // pred_check_branch
      %47 = sbr.rel (0) target = $region21
    $region20: #{tpu_custom_call.1} parent=1 // pred_region
      %48 = dma.done [#allocation6], 4096
    $region21: #{tpu_custom_call.1} parent=1 // pred_fallthru
      _
    // Predicated region
    $region22: #{tpu_custom_call.1} parent=1 // pred_check
      _
    $region23: #{tpu_custom_call.1} parent=1 // pred_check_branch
      %50 = sbr.rel (0) target = $region25
    $region24: #{tpu_custom_call.1} parent=1 // pred_region
      %51 = dma.done [#allocation6], 128
    $region25: #{tpu_custom_call.1} parent=1 // pred_fallthru
      _
    %v53 = vld [vmem:[#allocation2] sm:$0xff]
    %v54 = vpack.c.bf16 %v53, %v53
    %v55 = vld [vmem:[#allocation5] sm:$0xf]
    %v56 = vld [vmem:[#allocation5 + $0x4] sm:$0xf]
    %v57 = vld [vmem:[#allocation7] sm:$0x1]
    %v58 = vlaneseq
    %v59 = vshrl.u32 %v58, 7
    %v60 = vsub.s32 0, %v59
    %v61 = vrot.slane %v57, %v60
    %v64 = vunpack.c.l.b16 %v55
    %v65 = vunpack.c.l.b16 %v56
    %v66 = vpack.c.b16 %v65, %v64
    %vm68 = vcmask 130048
    %v70 = vsel %vm68, %v54, 0
    %72 = vmatprep.subr.bf16.mxu0 0
    %73 = vmatpush1.bf16.msra.mxu0 %v66
    %74 = vmatprep.subr.bf16.mxu0 0
    %75 = vmatpush1.bf16.msra.mxu0 0
    %76 = vmatprep.subr.bf16.mxu0 0
    %77 = vmatpush1.bf16.msra.mxu0 0
    %78 = vmatprep.subr.bf16.mxu0 0
    %79 = vmatpush1.bf16.msra.mxu0 0
    %80 = vmatprep.subr.bf16.mxu0 0
    %81 = vmatpush1.bf16.msra.mxu0 0
    %82 = vmatprep.subr.bf16.mxu0 0
    %83 = vmatpush1.bf16.msra.mxu0 0
    %84 = vmatprep.subr.bf16.mxu0 0
    %85 = vmatpush1.bf16.msra.mxu0 0
    %86 = vmatprep.subr.bf16.mxu0 0
    %87 = vmatpush1.bf16.msra.mxu0 0
    %88 = vmatprep.subr.bf16.mxu0 0
    %89 = vmatpush1.bf16.msra.mxu0 0
    %90 = vmatprep.subr.bf16.mxu0 0
    %91 = vmatpush1.bf16.msra.mxu0 0
    %92 = vmatprep.subr.bf16.mxu0 0
    %93 = vmatpush1.bf16.msra.mxu0 0
    %94 = vmatprep.subr.bf16.mxu0 0
    %95 = vmatpush1.bf16.msra.mxu0 0
    %96 = vmatprep.subr.bf16.mxu0 0
    %97 = vmatpush1.bf16.msra.mxu0 0
    %98 = vmatprep.subr.bf16.mxu0 0
    %99 = vmatpush1.bf16.msra.mxu0 0
    %100 = vmatprep.subr.bf16.mxu0 0
    %101 = vmatpush1.bf16.msra.mxu0 0
    %102 = vmatprep.subr.bf16.mxu0 0
    %103 = vmatpush1.bf16.msra.mxu0 0
    %104 = vmatprep.mubr.bf16.mxu0 0
    %105 = vmatmul.mubr.bf16.gmra.mrb[0].mxu0 %v70
    %v106 = vpop.f32.mrb[0].mxu0
    %v107 = vadd.f32 %v61, %v106
    %v108 = vpop.f32.mrb[0].mxu0
    %v109 = vpop.f32.mrb[0].mxu0
    %v110 = vpop.f32.mrb[0].mxu0
    %111 = vdwg.mxu0
    %v112 = vmax.f32 %v107, 0.0
    %v113 = vpack.c.bf16 %v112, %v112
    %s114 = scalar_lea.vmem [#allocation5], 64
    %v115 = vld [vmem:[%s114] sm:$0xf]
    %v116 = vld [vmem:[%s114 + $0x4] sm:$0xf]
    %v117 = vld [vmem:[%s114 + $0x8] sm:$0xf]
    %v118 = vld [vmem:[%s114 + $0xc] sm:$0xf]
    %v119 = vld [vmem:[%s114 + $0x10] sm:$0xf]
    %v120 = vld [vmem:[%s114 + $0x14] sm:$0xf]
    %v121 = vld [vmem:[%s114 + $0x18] sm:$0xf]
    %v122 = vld [vmem:[%s114 + $0x1c] sm:$0xf]
    %v123 = vld [vmem:[%s114 + $0x20] sm:$0xf]
    %v124 = vld [vmem:[%s114 + $0x24] sm:$0xf]
    %v125 = vld [vmem:[%s114 + $0x28] sm:$0xf]
    %v126 = vld [vmem:[%s114 + $0x2c] sm:$0xf]
    %v127 = vld [vmem:[%s114 + $0x30] sm:$0xf]
    %v128 = vld [vmem:[%s114 + $0x34] sm:$0xf]
    %v129 = vld [vmem:[%s114 + $0x38] sm:$0xf]
    %v130 = vld [vmem:[%s114 + $0x3c] sm:$0xf]
    %v131 = vld [vmem:[#allocation7 + $0x1] sm:$0x1]
    %v132 = vlaneseq
    %v133 = vshrl.u32 %v132, 7
    %v134 = vsub.s32 0, %v133
    %v135 = vrot.slane %v131, %v134
    %v152 = vunpack.c.l.b16 %v115
    %v153 = vunpack.c.l.b16 %v116
    %v154 = vunpack.c.l.b16 %v117
    %v155 = vunpack.c.l.b16 %v118
    %v156 = vunpack.c.l.b16 %v119
    %v157 = vunpack.c.l.b16 %v120
    %v158 = vunpack.c.l.b16 %v121
    %v159 = vunpack.c.l.b16 %v122
    %v160 = vunpack.c.l.b16 %v123
    %v161 = vunpack.c.l.b16 %v124
    %v162 = vunpack.c.l.b16 %v125
    %v163 = vunpack.c.l.b16 %v126
    %v164 = vunpack.c.l.b16 %v127
    %v165 = vunpack.c.l.b16 %v128
    %v166 = vunpack.c.l.b16 %v129
    %v167 = vunpack.c.l.b16 %v130
    %v168 = vpack.c.b16 %v153, %v152
    %v169 = vpack.c.b16 %v155, %v154
    %v170 = vpack.c.b16 %v157, %v156
    %v171 = vpack.c.b16 %v159, %v158
    %v172 = vpack.c.b16 %v161, %v160
    %v173 = vpack.c.b16 %v163, %v162
    %v174 = vpack.c.b16 %v165, %v164
    %v175 = vpack.c.b16 %v167, %v166
    %184 = vmatprep.subr.bf16.mxu0 0
    %185 = vmatpush1.bf16.msra.mxu0 %v168
    %186 = vmatprep.subr.bf16.mxu0 0
    %187 = vmatpush1.bf16.msra.mxu0 %v169
    %188 = vmatprep.subr.bf16.mxu0 0
    %189 = vmatpush1.bf16.msra.mxu0 %v170
    %190 = vmatprep.subr.bf16.mxu0 0
    %191 = vmatpush1.bf16.msra.mxu0 %v171
    %192 = vmatprep.subr.bf16.mxu0 0
    %193 = vmatpush1.bf16.msra.mxu0 %v172
    %194 = vmatprep.subr.bf16.mxu0 0
    %195 = vmatpush1.bf16.msra.mxu0 %v173
    %196 = vmatprep.subr.bf16.mxu0 0
    %197 = vmatpush1.bf16.msra.mxu0 %v174
    %198 = vmatprep.subr.bf16.mxu0 0
    %199 = vmatpush1.bf16.msra.mxu0 %v175
    %200 = vmatprep.subr.bf16.mxu0 0
    %201 = vmatpush1.bf16.msra.mxu0 0
    %202 = vmatprep.subr.bf16.mxu0 0
    %203 = vmatpush1.bf16.msra.mxu0 0
    %204 = vmatprep.subr.bf16.mxu0 0
    %205 = vmatpush1.bf16.msra.mxu0 0
    %206 = vmatprep.subr.bf16.mxu0 0
    %207 = vmatpush1.bf16.msra.mxu0 0
    %208 = vmatprep.subr.bf16.mxu0 0
    %209 = vmatpush1.bf16.msra.mxu0 0
    %210 = vmatprep.subr.bf16.mxu0 0
    %211 = vmatpush1.bf16.msra.mxu0 0
    %212 = vmatprep.subr.bf16.mxu0 0
    %213 = vmatpush1.bf16.msra.mxu0 0
    %214 = vmatprep.subr.bf16.mxu0 0
    %215 = vmatpush1.bf16.msra.mxu0 0
    %216 = vmatprep.mubr.bf16.mxu0 0
    %217 = vmatmul.mubr.bf16.gmra.mrb[0].mxu0 %v113
    %v218 = vpop.f32.mrb[0].mxu0
    %v219 = vadd.f32 %v135, %v218
    %v220 = vpop.f32.mrb[0].mxu0
    %v221 = vpop.f32.mrb[0].mxu0
    %v222 = vpop.f32.mrb[0].mxu0
    %223 = vdwg.mxu0
    %v224 = vmax.f32 %v219, 0.0
    %v225 = vpack.c.bf16 %v224, %v224
    %s226 = scalar_lea.vmem [#allocation5], 128
    %v227 = vld [vmem:[%s226] sm:$0xf]
    %v228 = vld [vmem:[%s226 + $0x4] sm:$0xf]
    %v229 = vld [vmem:[%s226 + $0x8] sm:$0xf]
    %v230 = vld [vmem:[%s226 + $0xc] sm:$0xf]
    %v231 = vld [vmem:[%s226 + $0x10] sm:$0xf]
    %v232 = vld [vmem:[%s226 + $0x14] sm:$0xf]
    %v233 = vld [vmem:[%s226 + $0x18] sm:$0xf]
    %v234 = vld [vmem:[%s226 + $0x1c] sm:$0xf]
    %v235 = vld [vmem:[%s226 + $0x20] sm:$0xf]
    %v236 = vld [vmem:[%s226 + $0x24] sm:$0xf]
    %v237 = vld [vmem:[%s226 + $0x28] sm:$0xf]
    %v238 = vld [vmem:[%s226 + $0x2c] sm:$0xf]
    %v239 = vld [vmem:[%s226 + $0x30] sm:$0xf]
    %v240 = vld [vmem:[%s226 + $0x34] sm:$0xf]
    %v241 = vld [vmem:[%s226 + $0x38] sm:$0xf]
    %v242 = vld [vmem:[%s226 + $0x3c] sm:$0xf]
    %v243 = vld [vmem:[#allocation7 + $0x2] sm:$0x1]
    %v244 = vlaneseq
    %v245 = vshrl.u32 %v244, 7
    %v246 = vsub.s32 0, %v245
    %v247 = vrot.slane %v243, %v246
    %v264 = vunpack.c.l.b16 %v227
    %v265 = vunpack.c.l.b16 %v228
    %v266 = vunpack.c.l.b16 %v229
    %v267 = vunpack.c.l.b16 %v230
    %v268 = vunpack.c.l.b16 %v231
    %v269 = vunpack.c.l.b16 %v232
    %v270 = vunpack.c.l.b16 %v233
    %v271 = vunpack.c.l.b16 %v234
    %v272 = vunpack.c.l.b16 %v235
    %v273 = vunpack.c.l.b16 %v236
    %v274 = vunpack.c.l.b16 %v237
    %v275 = vunpack.c.l.b16 %v238
    %v276 = vunpack.c.l.b16 %v239
    %v277 = vunpack.c.l.b16 %v240
    %v278 = vunpack.c.l.b16 %v241
    %v279 = vunpack.c.l.b16 %v242
    %v280 = vpack.c.b16 %v265, %v264
    %v281 = vpack.c.b16 %v267, %v266
    %v282 = vpack.c.b16 %v269, %v268
    %v283 = vpack.c.b16 %v271, %v270
    %v284 = vpack.c.b16 %v273, %v272
    %v285 = vpack.c.b16 %v275, %v274
    %v286 = vpack.c.b16 %v277, %v276
    %v287 = vpack.c.b16 %v279, %v278
    %296 = vmatprep.subr.bf16.mxu0 0
    %297 = vmatpush1.bf16.msra.mxu0 %v280
    %298 = vmatprep.subr.bf16.mxu0 0
    %299 = vmatpush1.bf16.msra.mxu0 %v281
    %300 = vmatprep.subr.bf16.mxu0 0
    %301 = vmatpush1.bf16.msra.mxu0 %v282
    %302 = vmatprep.subr.bf16.mxu0 0
    %303 = vmatpush1.bf16.msra.mxu0 %v283
    %304 = vmatprep.subr.bf16.mxu0 0
    %305 = vmatpush1.bf16.msra.mxu0 %v284
    %306 = vmatprep.subr.bf16.mxu0 0
    %307 = vmatpush1.bf16.msra.mxu0 %v285
    %308 = vmatprep.subr.bf16.mxu0 0
    %309 = vmatpush1.bf16.msra.mxu0 %v286
    %310 = vmatprep.subr.bf16.mxu0 0
    %311 = vmatpush1.bf16.msra.mxu0 %v287
    %312 = vmatprep.subr.bf16.mxu0 0
    %313 = vmatpush1.bf16.msra.mxu0 0
    %314 = vmatprep.subr.bf16.mxu0 0
    %315 = vmatpush1.bf16.msra.mxu0 0
    %316 = vmatprep.subr.bf16.mxu0 0
    %317 = vmatpush1.bf16.msra.mxu0 0
    %318 = vmatprep.subr.bf16.mxu0 0
    %319 = vmatpush1.bf16.msra.mxu0 0
    %320 = vmatprep.subr.bf16.mxu0 0
    %321 = vmatpush1.bf16.msra.mxu0 0
    %322 = vmatprep.subr.bf16.mxu0 0
    %323 = vmatpush1.bf16.msra.mxu0 0
    %324 = vmatprep.subr.bf16.mxu0 0
    %325 = vmatpush1.bf16.msra.mxu0 0
    %326 = vmatprep.subr.bf16.mxu0 0
    %327 = vmatpush1.bf16.msra.mxu0 0
    %328 = vmatprep.mubr.bf16.mxu0 0
    %329 = vmatmul.mubr.bf16.gmra.mrb[0].mxu0 %v225
    %v330 = vpop.f32.mrb[0].mxu0
    %v331 = vadd.f32 %v247, %v330
    %v332 = vpop.f32.mrb[0].mxu0
    %v333 = vpop.f32.mrb[0].mxu0
    %v334 = vpop.f32.mrb[0].mxu0
    %335 = vdwg.mxu0
    %v336 = vpack.c.bf16 %v331, %v331
    %s337 = scalar_lea.vmem [#allocation5], 192
    %v338 = vld [vmem:[%s337] sm:$0xf]
    %v339 = vld [vmem:[%s337 + $0x4] sm:$0xf]
    %v340 = vld [vmem:[%s337 + $0x8] sm:$0xf]
    %v341 = vld [vmem:[%s337 + $0xc] sm:$0xf]
    %v342 = vld [vmem:[%s337 + $0x10] sm:$0xf]
    %v343 = vld [vmem:[%s337 + $0x14] sm:$0xf]
    %v344 = vld [vmem:[%s337 + $0x18] sm:$0xf]
    %v345 = vld [vmem:[%s337 + $0x1c] sm:$0xf]
    %v346 = vld [vmem:[%s337 + $0x20] sm:$0xf]
    %v347 = vld [vmem:[%s337 + $0x24] sm:$0xf]
    %v348 = vld [vmem:[%s337 + $0x28] sm:$0xf]
    %v349 = vld [vmem:[%s337 + $0x2c] sm:$0xf]
    %v350 = vld [vmem:[%s337 + $0x30] sm:$0xf]
    %v351 = vld [vmem:[%s337 + $0x34] sm:$0xf]
    %v352 = vld [vmem:[%s337 + $0x38] sm:$0xf]
    %v353 = vld [vmem:[%s337 + $0x3c] sm:$0xf]
    %v354 = vld [vmem:[#allocation7 + $0x3] sm:$0x1]
    %v355 = vlaneseq
    %v356 = vshrl.u32 %v355, 7
    %v357 = vsub.s32 0, %v356
    %v358 = vrot.slane %v354, %v357
    %v375 = vunpack.c.l.b16 %v338
    %v376 = vunpack.c.l.b16 %v339
    %v377 = vunpack.c.l.b16 %v340
    %v378 = vunpack.c.l.b16 %v341
    %v379 = vunpack.c.l.b16 %v342
    %v380 = vunpack.c.l.b16 %v343
    %v381 = vunpack.c.l.b16 %v344
    %v382 = vunpack.c.l.b16 %v345
    %v383 = vunpack.c.l.b16 %v346
    %v384 = vunpack.c.l.b16 %v347
    %v385 = vunpack.c.l.b16 %v348
    %v386 = vunpack.c.l.b16 %v349
    %v387 = vunpack.c.l.b16 %v350
    %v388 = vunpack.c.l.b16 %v351
    %v389 = vunpack.c.l.b16 %v352
    %v390 = vunpack.c.l.b16 %v353
    %v391 = vpack.c.b16 %v376, %v375
    %v392 = vpack.c.b16 %v378, %v377
    %v393 = vpack.c.b16 %v380, %v379
    %v394 = vpack.c.b16 %v382, %v381
    %v395 = vpack.c.b16 %v384, %v383
    %v396 = vpack.c.b16 %v386, %v385
    %v397 = vpack.c.b16 %v388, %v387
    %v398 = vpack.c.b16 %v390, %v389
    %407 = vmatprep.subr.bf16.mxu0 0
    %408 = vmatpush1.bf16.msra.mxu0 %v391
    %409 = vmatprep.subr.bf16.mxu0 0
    %410 = vmatpush1.bf16.msra.mxu0 %v392
    %411 = vmatprep.subr.bf16.mxu0 0
    %412 = vmatpush1.bf16.msra.mxu0 %v393
    %413 = vmatprep.subr.bf16.mxu0 0
    %414 = vmatpush1.bf16.msra.mxu0 %v394
    %415 = vmatprep.subr.bf16.mxu0 0
    %416 = vmatpush1.bf16.msra.mxu0 %v395
    %417 = vmatprep.subr.bf16.mxu0 0
    %418 = vmatpush1.bf16.msra.mxu0 %v396
    %419 = vmatprep.subr.bf16.mxu0 0
    %420 = vmatpush1.bf16.msra.mxu0 %v397
    %421 = vmatprep.subr.bf16.mxu0 0
    %422 = vmatpush1.bf16.msra.mxu0 %v398
    %423 = vmatprep.subr.bf16.mxu0 0
    %424 = vmatpush1.bf16.msra.mxu0 0
    %425 = vmatprep.subr.bf16.mxu0 0
    %426 = vmatpush1.bf16.msra.mxu0 0
    %427 = vmatprep.subr.bf16.mxu0 0
    %428 = vmatpush1.bf16.msra.mxu0 0
    %429 = vmatprep.subr.bf16.mxu0 0
    %430 = vmatpush1.bf16.msra.mxu0 0
    %431 = vmatprep.subr.bf16.mxu0 0
    %432 = vmatpush1.bf16.msra.mxu0 0
    %433 = vmatprep.subr.bf16.mxu0 0
    %434 = vmatpush1.bf16.msra.mxu0 0
    %435 = vmatprep.subr.bf16.mxu0 0
    %436 = vmatpush1.bf16.msra.mxu0 0
    %437 = vmatprep.subr.bf16.mxu0 0
    %438 = vmatpush1.bf16.msra.mxu0 0
    %439 = vmatprep.mubr.bf16.mxu0 0
    %440 = vmatmul.mubr.bf16.gmra.mrb[0].mxu0 %v336
    %v441 = vpop.f32.mrb[0].mxu0
    %v442 = vadd.f32 %v358, %v441
    %v443 = vpop.f32.mrb[0].mxu0
    %v444 = vpop.f32.mrb[0].mxu0
    %v445 = vpop.f32.mrb[0].mxu0
    %446 = vdwg.mxu0
    %v447 = vlaneseq
    %v448 = vand.u32 %v447, 127
    %v449 = vmax.f32 %v442, 0.0
    %v450 = vand.u32 2147483647, %v442
    %v451 = vsub.f32 0.0, %v450
    %v452 = vmul.f32 %v451, 1.442695
    %v453 = vpow.pop %v452
    %v454 = vadd.f32 %v453, 1.0
    %v455 = vlog2.pop %v454
    %v456 = vmul.f32 %v455, 0.6931472
    %v457 = vmul.f32 -0.5, %v453
    %v458 = vadd.f32 %v457, 1.0
    %v459 = vmul.f32 %v458, %v453
    %v460 = vand.u32 2147483647, %v453
    %vm461 = vcmp.lt.f32.partialorder %v460, 0.0004427343
    %v462 = vsel %vm461, %v459, %v456
    %v463 = vadd.f32 %v449, %v462
    %v464 = vadd.f32 %v463, 0.0001
    %vm465 = vcmp.lt.s32.totalorder %v448, 20
    %v466 = vtanh.pop %v442
    %vm467 = vcmp.lt.s32.totalorder %v448, 40
    %v468 = vsel %vm467, %v464, %v442
    %v469 = vsel %vm465, %v466, %v468
    %470 = vst [vmem:[#allocation8] sm:$0xff] %v469
    // Predicated region
    $region26: #{tpu_custom_call.1} parent=1 // pred_check
      _
    $region27: #{tpu_custom_call.1} parent=1 // pred_check_branch
      %472 = sbr.rel (0) target = $region29
    $region28: #{tpu_custom_call.1} parent=1 // pred_region
      %s474 = ssub.s32 128, 128
      %475 = vsyncadd [#allocation4], %s474
      %s477 = sshll.u32 [#allocation8], 4
      %s478 = int_to_ptr.vmem [resolvable:$true] %s477
      %480 = dma.vmem_to_hbm [thread:$0]  %s478, 128, %s3, [#allocation4]
    $region29: #{tpu_custom_call.1} parent=1 // pred_fallthru
      _
    // Predicated region
    $region30: #{tpu_custom_call.1} parent=1 // pred_check
      _
    $region31: #{tpu_custom_call.1} parent=1 // pred_check_branch
      %482 = sbr.rel (0) target = $region33
    $region32: #{tpu_custom_call.1} parent=1 // pred_region
      %483 = dma.done [#allocation4], 128
    $region33: #{tpu_custom_call.1} parent=1 // pred_fallthru
      _
    %484 = vsyncpa [#allocation3], 1
    %485 = vsyncpa [#allocation6], 1
    %486 = vsyncpa [#allocation4], 1

</llo_original>
